<compile_context>
chip_gen: v7x
topology: tpu7x:2x2x1
jax: 0.10.0
libtpu: 0.0.40
codegen_flags: <defaults>
</compile_context>

<pallas_src>
import jax
import jax.numpy as jnp
from jax.experimental import pallas as pl
from jax.experimental.pallas import tpu as pltpu


def mlp_kernel(x_ref, w1_ref, b1_ref, w2_ref, b2_ref, w3_ref, b3_ref, o_ref):
    # Layer 1: Linear(F, 128) + ReLU.  f32 operands (K=32, MXU has huge slack;
    # avoids a wrapper-side cast of x and keeps closer parity with torch f32).
    h1 = jnp.dot(x_ref[...], w1_ref[...], preferred_element_type=jnp.float32)
    h1 = jnp.maximum(h1 + b1_ref[...], 0.0)                 # f32 VPU work

    # Layer 2: Linear(128, 64) + ReLU.  bf16 MXU operands, f32 accumulate.
    h2 = jnp.dot(h1.astype(jnp.bfloat16), w2_ref[...],
                 preferred_element_type=jnp.float32)
    h2 = jnp.maximum(h2 + b2_ref[...], 0.0)

    # Layer 3: Linear(64, O_pad), no activation.  O padded to 128 lanes so the
    # store is a full-lane unmasked vst; stored as bf16 to halve HBM writeback.
    out = jnp.dot(h2.astype(jnp.bfloat16), w3_ref[...],
                  preferred_element_type=jnp.float32)
    o_ref[...] = (out + b3_ref[...]).astype(o_ref.dtype)


def _choose_batch_tile(B, tb_max=4096):
    """MXU-aligned (multiple of 256) batch tile.

    Large tiles amortize per-grid-step overhead (~0.35us) and reach ~85% of
    HBM roofline at >=512 rows; per-row VMEM footprint is ~1.2 KB so even
    tb=4096 double-buffered stays far under the scoped-VMEM default.  We keep
    >=2 grid steps whenever B > 256 so the "parallel" axis can shard across
    both v7x TensorCores.
    """
    if B <= 256:
        return 256
    n_steps = max(2, pl.cdiv(B, tb_max))
    tb = pl.cdiv(pl.cdiv(B, n_steps), 256) * 256
    return min(tb, tb_max)


def prepare_params(w1, b1, w2, b2, w3, b3):
    """One-time cast/pad of the weights (hoisted out of the per-call wrapper).

    Weights are stored (in, out).  Returns (packed_params, n_output).
    """
    O = w3.shape[1]
    O_pad = max(128, pl.cdiv(O, 128) * 128)     # lane-dense output width

    w1f = w1.astype(jnp.float32)                              # layer 1 stays f32
    b1f = b1.reshape(1, -1).astype(jnp.float32)
    w2b = w2.astype(jnp.bfloat16)
    b2f = b2.reshape(1, -1).astype(jnp.float32)
    w3b = jnp.pad(w3, ((0, 0), (0, O_pad - O))).astype(jnp.bfloat16)
    b3f = jnp.pad(b3.reshape(1, O), ((0, 0), (0, O_pad - O))).astype(jnp.float32)
    return (w1f, b1f, w2b, b2f, w3b, b3f), O


def net_forward(x, prepared_params, n_output):
    """Pallas forward.  x: (B, F) f32.  Returns (B, n_output) f32."""
    w1f, b1f, w2b, b2f, w3b, b3f = prepared_params
    B, F = x.shape
    H1 = w1f.shape[1]
    H2 = w2b.shape[1]
    O_pad = w3b.shape[1]

    tb = _choose_batch_tile(B)
    B_pad = pl.cdiv(B, tb) * tb
    grid = (B_pad // tb,)

    xf = x.astype(jnp.float32)
    if B_pad != B:
        xf = jnp.pad(xf, ((0, B_pad - B), (0, 0)))

    # Weights/biases live in VMEM for the whole grid (constant index_map).
    def resident(a):
        return pl.BlockSpec(a.shape, lambda i: (0,) * a.ndim)

    flops = 2 * B_pad * (F * H1 + H1 * H2 + H2 * O_pad)
    bytes_accessed = (xf.size * 4
                      + w1f.size * 4 + w2b.size * 2 + w3b.size * 2
                      + (b1f.size + b2f.size + b3f.size) * 4
                      + B_pad * O_pad * 2)                     # bf16 writeback

    out = pl.pallas_call(
        mlp_kernel,
        out_shape=jax.ShapeDtypeStruct((B_pad, O_pad), jnp.bfloat16),
        grid=grid,
        in_specs=[
            pl.BlockSpec((tb, F), lambda i: (i, 0)),           # x tiled over batch
            resident(w1f), resident(b1f),
            resident(w2b), resident(b2f),
            resident(w3b), resident(b3f),
        ],
        out_specs=pl.BlockSpec((tb, O_pad), lambda i: (i, 0)),
        compiler_params=pltpu.CompilerParams(
            dimension_semantics=("parallel",),                 # megacore sharding
        ),
        cost_estimate=pl.CostEstimate(
            flops=flops, transcendentals=0, bytes_accessed=bytes_accessed),
    )(xf, w1f, b1f, w2b, b2f, w3b, b3f)

    # Callers that can consume the padded bf16 slab directly should do so; this
    # slice+cast is a tiny one-off XLA op at these sizes.
    return out[:B, :n_output].astype(jnp.float32)


def init_params(key, n_feature, n_output):
    """Deterministic init mimicking torch.nn.Linear (U[-1/sqrt(fan_in), +])."""
    def linear(k, fan_in, fan_out):
        kw, kb = jax.random.split(k)
        bound = 1.0 / jnp.sqrt(fan_in)
        w = jax.random.uniform(kw, (fan_in, fan_out), jnp.float32, -bound, bound)
        b = jax.random.uniform(kb, (1, fan_out), jnp.float32, -bound, bound)
        return w, b

    k1, k2, k3 = jax.random.split(key, 3)
    w1, b1 = linear(k1, n_feature, 128)
    w2, b2 = linear(k2, 128, 64)
    w3, b3 = linear(k3, 64, n_output)
    return w1, b1, w2, b2, w3, b3


def reference_forward_f32(x, w1, b1, w2, b2, w3, b3):
    h1 = jnp.maximum(x @ w1 + b1, 0.0)
    h2 = jnp.maximum(h1 @ w2 + b2, 0.0)
    return h2 @ w3 + b3


def reference_forward_kernel_path(x, w1, b1, w2, b2, w3, b3):
    """Mirrors the kernel's dtype path (f32 layer-1, bf16 layers 2/3, bf16 out)."""
    bf = jnp.bfloat16
    h1 = jnp.dot(x, w1, preferred_element_type=jnp.float32)
    h1 = jnp.maximum(h1 + b1, 0.0)
    h2 = jnp.dot(h1.astype(bf), w2.astype(bf), preferred_element_type=jnp.float32)
    h2 = jnp.maximum(h2 + b2, 0.0)
    out = jnp.dot(h2.astype(bf), w3.astype(bf), preferred_element_type=jnp.float32)
    return (out + b3).astype(bf).astype(jnp.float32)


if __name__ == "__main__":
    key = jax.random.PRNGKey(0)
    kx, kp = jax.random.split(key)

    batch, n_feature, n_output = 512, 32, 4
    x = jax.random.normal(kx, (batch, n_feature), jnp.float32)
    # standardize like the original script (mean/std over axis 0)
    mean = jnp.mean(x, 0)
    std = jnp.std(x, 0)
    x = (x - mean) / std

    raw_params = init_params(kp, n_feature, n_output)
    prepared, out_dim = prepare_params(*raw_params)     # one-time cast/pad

    fwd = jax.jit(lambda xx: net_forward(xx, prepared, out_dim))
    out = jax.block_until_ready(fwd(x))
    assert out.shape == (batch, n_output)

    # Check against a reference using the same dtype path as the kernel.
    ref_kp = reference_forward_kernel_path(x, *raw_params)
    assert jnp.allclose(out, ref_kp, atol=3e-2, rtol=3e-2), "kernel-path ref mismatch"

    # Loose sanity check against the pure-f32 reference (bf16 rounding in L2/L3).
    ref_f32 = reference_forward_f32(x, *raw_params)
    assert jnp.allclose(out, ref_f32, atol=5e-2, rtol=5e-2), "f32 ref mismatch"

    print("KERNEL_OK")
</pallas_src>

<mosaic_0001>
module attributes {stable_mosaic.version = 11 : i64} {
  func.func @mlp_kernel(%arg0: i32, %arg1: memref<256x32xf32, #tpu.memory_space<vmem>>, %arg2: memref<32x128xf32, #tpu.memory_space<vmem>>, %arg3: memref<1x128xf32, #tpu.memory_space<vmem>>, %arg4: memref<128x64xbf16, #tpu.memory_space<vmem>>, %arg5: memref<1x64xf32, #tpu.memory_space<vmem>>, %arg6: memref<64x128xbf16, #tpu.memory_space<vmem>>, %arg7: memref<1x128xf32, #tpu.memory_space<vmem>>, %arg8: memref<256x128xbf16, #tpu.memory_space<vmem>>) attributes {dimension_semantics = [#tpu.dimension_semantics<parallel>], iteration_bounds = array<i64: 2>, scalar_prefetch = 0 : i64, scratch_operands = 0 : i64, tpu.core_type = #tpu.core_type<tc>, window_params = [{transform_indices = @transform_0, window_bounds = array<i64: 256, 32>}, {pipeline_mode = #tpu.pipeline_mode<synchronous>, transform_indices = @transform_1, window_bounds = array<i64: 32, 128>}, {pipeline_mode = #tpu.pipeline_mode<synchronous>, transform_indices = @transform_2, window_bounds = array<i64: 1, 128>}, {pipeline_mode = #tpu.pipeline_mode<synchronous>, transform_indices = @transform_3, window_bounds = array<i64: 128, 64>}, {pipeline_mode = #tpu.pipeline_mode<synchronous>, transform_indices = @transform_4, window_bounds = array<i64: 1, 64>}, {pipeline_mode = #tpu.pipeline_mode<synchronous>, transform_indices = @transform_5, window_bounds = array<i64: 64, 128>}, {pipeline_mode = #tpu.pipeline_mode<synchronous>, transform_indices = @transform_6, window_bounds = array<i64: 1, 128>}, {transform_indices = @transform_7, window_bounds = array<i64: 256, 128>}]} {
    %c0 = arith.constant 0 : index
    %c0_0 = arith.constant 0 : index
    %0 = vector.load %arg1[%c0, %c0_0] : memref<256x32xf32, #tpu.memory_space<vmem>>, vector<256x32xf32>
    %c0_1 = arith.constant 0 : index
    %c0_2 = arith.constant 0 : index
    %1 = vector.load %arg2[%c0_1, %c0_2] : memref<32x128xf32, #tpu.memory_space<vmem>>, vector<32x128xf32>
    %cst = arith.constant dense<0.000000e+00> : vector<256x128xf32>
    %2 = tpu.matmul %0, %1, %cst {dimension_numbers = #tpu.dot_dimension_numbers<[1], [0], [0], [1], [0, 0, 1, 1], [], []>} : vector<256x32xf32>, vector<32x128xf32>, vector<256x128xf32> -> vector<256x128xf32>
    %c0_3 = arith.constant 0 : index
    %c0_4 = arith.constant 0 : index
    %3 = vector.load %arg3[%c0_3, %c0_4] : memref<1x128xf32, #tpu.memory_space<vmem>>, vector<1x128xf32>
    %4 = vector.broadcast %3 : vector<1x128xf32> to vector<256x128xf32>
    %5 = arith.addf %2, %4 : vector<256x128xf32>
    %cst_5 = arith.constant 0.000000e+00 : f32
    %6 = vector.broadcast %cst_5 : f32 to vector<256x128xf32>
    %7 = arith.maximumf %5, %6 : vector<256x128xf32>
    %8 = arith.truncf %7 : vector<256x128xf32> to vector<256x128xbf16>
    %c0_6 = arith.constant 0 : index
    %c0_7 = arith.constant 0 : index
    %9 = vector.load %arg4[%c0_6, %c0_7] : memref<128x64xbf16, #tpu.memory_space<vmem>>, vector<128x64xbf16>
    %cst_8 = arith.constant dense<0.000000e+00> : vector<256x64xf32>
    %10 = tpu.matmul %8, %9, %cst_8 {dimension_numbers = #tpu.dot_dimension_numbers<[1], [0], [0], [1], [0, 0, 1, 1], [], []>} : vector<256x128xbf16>, vector<128x64xbf16>, vector<256x64xf32> -> vector<256x64xf32>
    %c0_9 = arith.constant 0 : index
    %c0_10 = arith.constant 0 : index
    %11 = vector.load %arg5[%c0_9, %c0_10] : memref<1x64xf32, #tpu.memory_space<vmem>>, vector<1x64xf32>
    %12 = vector.broadcast %11 : vector<1x64xf32> to vector<256x64xf32>
    %13 = arith.addf %10, %12 : vector<256x64xf32>
    %cst_11 = arith.constant 0.000000e+00 : f32
    %14 = vector.broadcast %cst_11 : f32 to vector<256x64xf32>
    %15 = arith.maximumf %13, %14 : vector<256x64xf32>
    %16 = arith.truncf %15 : vector<256x64xf32> to vector<256x64xbf16>
    %c0_12 = arith.constant 0 : index
    %c0_13 = arith.constant 0 : index
    %17 = vector.load %arg6[%c0_12, %c0_13] : memref<64x128xbf16, #tpu.memory_space<vmem>>, vector<64x128xbf16>
    %cst_14 = arith.constant dense<0.000000e+00> : vector<256x128xf32>
    %18 = tpu.matmul %16, %17, %cst_14 {dimension_numbers = #tpu.dot_dimension_numbers<[1], [0], [0], [1], [0, 0, 1, 1], [], []>} : vector<256x64xbf16>, vector<64x128xbf16>, vector<256x128xf32> -> vector<256x128xf32>
    %c0_15 = arith.constant 0 : index
    %c0_16 = arith.constant 0 : index
    %19 = vector.load %arg7[%c0_15, %c0_16] : memref<1x128xf32, #tpu.memory_space<vmem>>, vector<1x128xf32>
    %20 = vector.broadcast %19 : vector<1x128xf32> to vector<256x128xf32>
    %21 = arith.addf %18, %20 : vector<256x128xf32>
    %22 = arith.truncf %21 : vector<256x128xf32> to vector<256x128xbf16>
    %c0_17 = arith.constant 0 : index
    %c0_18 = arith.constant 0 : index
    %23 = vector.load %arg8[%c0_17, %c0_18] : memref<256x128xbf16, #tpu.memory_space<vmem>>, vector<256x128xbf16>
    tpu.vector_store %arg8[%c0_17, %c0_18], %22 {strides = array<i32>} : memref<256x128xbf16, #tpu.memory_space<vmem>>, vector<256x128xbf16>,
    return
  }
  func.func @transform_0(%arg0: i32) -> (i32, i32) {
    %c0_i32 = arith.constant 0 : i32
    %c0_i32_0 = arith.constant 0 : i32
    return %arg0, %c0_i32 : i32, i32
  }
  func.func @transform_1(%arg0: i32) -> (i32, i32) {
    %c0_i32 = arith.constant 0 : i32
    %c0_i32_0 = arith.constant 0 : i32
    %c0_i32_1 = arith.constant 0 : i32
    return %c0_i32, %c0_i32_0 : i32, i32
  }
  func.func @transform_2(%arg0: i32) -> (i32, i32) {
    %c0_i32 = arith.constant 0 : i32
    %c0_i32_0 = arith.constant 0 : i32
    %c0_i32_1 = arith.constant 0 : i32
    return %c0_i32, %c0_i32_0 : i32, i32
  }
  func.func @transform_3(%arg0: i32) -> (i32, i32) {
    %c0_i32 = arith.constant 0 : i32
    %c0_i32_0 = arith.constant 0 : i32
    %c0_i32_1 = arith.constant 0 : i32
    return %c0_i32, %c0_i32_0 : i32, i32
  }
  func.func @transform_4(%arg0: i32) -> (i32, i32) {
    %c0_i32 = arith.constant 0 : i32
    %c0_i32_0 = arith.constant 0 : i32
    %c0_i32_1 = arith.constant 0 : i32
    return %c0_i32, %c0_i32_0 : i32, i32
  }
  func.func @transform_5(%arg0: i32) -> (i32, i32) {
    %c0_i32 = arith.constant 0 : i32
    %c0_i32_0 = arith.constant 0 : i32
    %c0_i32_1 = arith.constant 0 : i32
    return %c0_i32, %c0_i32_0 : i32, i32
  }
  func.func @transform_6(%arg0: i32) -> (i32, i32) {
    %c0_i32 = arith.constant 0 : i32
    %c0_i32_0 = arith.constant 0 : i32
    %c0_i32_1 = arith.constant 0 : i32
    return %c0_i32, %c0_i32_0 : i32, i32
  }
  func.func @transform_7(%arg0: i32) -> (i32, i32) {
    %c0_i32 = arith.constant 0 : i32
    %c0_i32_0 = arith.constant 0 : i32
    return %arg0, %c0_i32 : i32, i32
  }
}

</mosaic_0001>

<llo_original>
// kernel: _lambda_.1
$region0: #{_lambda_.1}
  #allocation0 [shape = 'u32[]', space=smem, size = 0x4, offset = 0x4, fixed_abs, tag = 'smem constant byte address 0x4 - core index']
  #allocation1 [shape = 'u32[144,128]{1,0:T(1,128)}', space=vmem, size = 0x12000, scoped, tag = 'internal scratch']
  %s0 = inlined_call_operand.vmem [shape: f32[512,32], index: 0, kind: input, shape index: {}]
  %s1 = inlined_call_operand.vmem [shape: f32[32,128], index: 1, kind: input, shape index: {}]
  %s2 = inlined_call_operand.vmem [shape: f32[1,128], index: 2, kind: input, shape index: {}]
  %s3 = inlined_call_operand.vmem [shape: bf16[128,64], index: 3, kind: input, shape index: {}]
  %s4 = inlined_call_operand.vmem [shape: f32[1,64], index: 4, kind: input, shape index: {}]
  %s5 = inlined_call_operand.vmem [shape: bf16[64,128], index: 5, kind: input, shape index: {}]
  %s6 = inlined_call_operand.vmem [shape: f32[1,128], index: 6, kind: input, shape index: {}]
  %s7 = inlined_call_operand.vmem [shape: bf16[512,128], index: 7, kind: output, shape index: {}]
  %s8 = sld [smem:[#allocation0]]
  $region61: #{_lambda_.1} parent=0
    _
  %s10 = ssub.s32 1, %s8
  %s11 = scalar_select 0, %s10, %s8
  loop: start=0, step=1, limit=4
  $region2: #{_lambda_.1} parent=0 // loop_pre_header
    _
  $region3: #{_lambda_.1} parent=0 // loop_header
    %s13 = sphi 0, %s17
    %p14 = scmp.ge.s32.totalorder %s13, 4
    %s23 = sphi 0, %s25
    %s26 = sphi 0, %s23
    %s27 = sphi 0, %s26
    %s43 = sphi 0, %s27
    %s47 = sphi 0, %s47
    %s49 = sphi 0, %s47
    %s50 = sphi 0, %s49
    %s64 = sphi 0, %s50
    %s68 = sphi 0, %s68
    %s70 = sphi 0, %s68
    %s71 = sphi 0, %s70
    %s85 = sphi 0, %s71
    %s89 = sphi 0, %s89
    %s91 = sphi 0, %s89
    %s92 = sphi 0, %s91
    %s106 = sphi 0, %s92
    %s110 = sphi 0, %s110
    %s112 = sphi 0, %s110
    %s113 = sphi 0, %s112
    %s127 = sphi 0, %s113
    %s131 = sphi 0, %s131
    %s133 = sphi 0, %s131
    %s134 = sphi 0, %s133
    %s148 = sphi 0, %s134
    %s152 = sphi 0, %s152
    %s154 = sphi 0, %s152
    %s155 = sphi 0, %s154
    %s169 = sphi 0, %s155
    %s175 = sphi 0, %s177
    %s178 = sphi 0, %s175
    %s179 = sphi 0, %s178
    %s195 = sphi 0, %s179
  $region4: #{_lambda_.1} parent=0 // loop_header_branch
    %16 = sbr.rel (%p14) target = $region8
  $region5: #{_lambda_.1} parent=0 // loop_body
    %s18 = ssub.s32 %s13, 1
    %s19 = ssub.s32 %s13, 2
    %s20 = sadd.s32 %s13, 1
    %s21 = ssub.s32 %s13, %s20
    %p22 = scmp.eq.s32.totalorder %s21, 0
    %s24 = sadd.s32 %s23, 1
    %s25 = scalar_select %p22, %s23, %s24
    %p28 = pneg %p22
    %p29 = scmp.eq.s32.totalorder %s13, 1
    %p30 = por %p28, %p29
    %p31 = scmp.ne.s32.totalorder %s23, %s26
    %p32 = scmp.eq.s32.totalorder %s13, 0
    %p33 = por %p31, %p32
    %p34 = scmp.ne.s32.totalorder %s23, %s26
    %p35 = scmp.eq.s32.totalorder %s18, 1
    %p36 = por %p34, %p35
    %p37 = scmp.ne.s32.totalorder %s26, %s27
    %p38 = scmp.eq.s32.totalorder %s18, 0
    %p39 = por %p37, %p38
    %p40 = scmp.ne.s32.totalorder %s26, %s27
    %p41 = scmp.eq.s32.totalorder %s19, 1
    %p42 = por %p40, %p41
    %p44 = scmp.ne.s32.totalorder %s27, %s43
    %p45 = scmp.eq.s32.totalorder %s19, 0
    %p46 = por %p44, %p45
    %s48 = sadd.s32 %s47, 1
    %p51 = scmp.eq.s32.totalorder %s13, 1
    %p52 = scmp.ne.s32.totalorder %s47, %s49
    %p53 = scmp.eq.s32.totalorder %s13, 0
    %p54 = por %p52, %p53
    %p55 = scmp.ne.s32.totalorder %s47, %s49
    %p56 = scmp.eq.s32.totalorder %s18, 1
    %p57 = por %p55, %p56
    %p58 = scmp.ne.s32.totalorder %s49, %s50
    %p59 = scmp.eq.s32.totalorder %s18, 0
    %p60 = por %p58, %p59
    %p61 = scmp.ne.s32.totalorder %s49, %s50
    %p62 = scmp.eq.s32.totalorder %s19, 1
    %p63 = por %p61, %p62
    %p65 = scmp.ne.s32.totalorder %s50, %s64
    %p66 = scmp.eq.s32.totalorder %s19, 0
    %p67 = por %p65, %p66
    %s69 = sadd.s32 %s68, 1
    %p72 = scmp.eq.s32.totalorder %s13, 1
    %p73 = scmp.ne.s32.totalorder %s68, %s70
    %p74 = scmp.eq.s32.totalorder %s13, 0
    %p75 = por %p73, %p74
    %p76 = scmp.ne.s32.totalorder %s68, %s70
    %p77 = scmp.eq.s32.totalorder %s18, 1
    %p78 = por %p76, %p77
    %p79 = scmp.ne.s32.totalorder %s70, %s71
    %p80 = scmp.eq.s32.totalorder %s18, 0
    %p81 = por %p79, %p80
    %p82 = scmp.ne.s32.totalorder %s70, %s71
    %p83 = scmp.eq.s32.totalorder %s19, 1
    %p84 = por %p82, %p83
    %p86 = scmp.ne.s32.totalorder %s71, %s85
    %p87 = scmp.eq.s32.totalorder %s19, 0
    %p88 = por %p86, %p87
    %s90 = sadd.s32 %s89, 1
    %p93 = scmp.eq.s32.totalorder %s13, 1
    %p94 = scmp.ne.s32.totalorder %s89, %s91
    %p95 = scmp.eq.s32.totalorder %s13, 0
    %p96 = por %p94, %p95
    %p97 = scmp.ne.s32.totalorder %s89, %s91
    %p98 = scmp.eq.s32.totalorder %s18, 1
    %p99 = por %p97, %p98
    %p100 = scmp.ne.s32.totalorder %s91, %s92
    %p101 = scmp.eq.s32.totalorder %s18, 0
    %p102 = por %p100, %p101
    %p103 = scmp.ne.s32.totalorder %s91, %s92
    %p104 = scmp.eq.s32.totalorder %s19, 1
    %p105 = por %p103, %p104
    %p107 = scmp.ne.s32.totalorder %s92, %s106
    %p108 = scmp.eq.s32.totalorder %s19, 0
    %p109 = por %p107, %p108
    %s111 = sadd.s32 %s110, 1
    %p114 = scmp.eq.s32.totalorder %s13, 1
    %p115 = scmp.ne.s32.totalorder %s110, %s112
    %p116 = scmp.eq.s32.totalorder %s13, 0
    %p117 = por %p115, %p116
    %p118 = scmp.ne.s32.totalorder %s110, %s112
    %p119 = scmp.eq.s32.totalorder %s18, 1
    %p120 = por %p118, %p119
    %p121 = scmp.ne.s32.totalorder %s112, %s113
    %p122 = scmp.eq.s32.totalorder %s18, 0
    %p123 = por %p121, %p122
    %p124 = scmp.ne.s32.totalorder %s112, %s113
    %p125 = scmp.eq.s32.totalorder %s19, 1
    %p126 = por %p124, %p125
    %p128 = scmp.ne.s32.totalorder %s113, %s127
    %p129 = scmp.eq.s32.totalorder %s19, 0
    %p130 = por %p128, %p129
    %s132 = sadd.s32 %s131, 1
    %p135 = scmp.eq.s32.totalorder %s13, 1
    %p136 = scmp.ne.s32.totalorder %s131, %s133
    %p137 = scmp.eq.s32.totalorder %s13, 0
    %p138 = por %p136, %p137
    %p139 = scmp.ne.s32.totalorder %s131, %s133
    %p140 = scmp.eq.s32.totalorder %s18, 1
    %p141 = por %p139, %p140
    %p142 = scmp.ne.s32.totalorder %s133, %s134
    %p143 = scmp.eq.s32.totalorder %s18, 0
    %p144 = por %p142, %p143
    %p145 = scmp.ne.s32.totalorder %s133, %s134
    %p146 = scmp.eq.s32.totalorder %s19, 1
    %p147 = por %p145, %p146
    %p149 = scmp.ne.s32.totalorder %s134, %s148
    %p150 = scmp.eq.s32.totalorder %s19, 0
    %p151 = por %p149, %p150
    %s153 = sadd.s32 %s152, 1
    %p156 = scmp.eq.s32.totalorder %s13, 1
    %p157 = scmp.ne.s32.totalorder %s152, %s154
    %p158 = scmp.eq.s32.totalorder %s13, 0
    %p159 = por %p157, %p158
    %p160 = scmp.ne.s32.totalorder %s152, %s154
    %p161 = scmp.eq.s32.totalorder %s18, 1
    %p162 = por %p160, %p161
    %p163 = scmp.ne.s32.totalorder %s154, %s155
    %p164 = scmp.eq.s32.totalorder %s18, 0
    %p165 = por %p163, %p164
    %p166 = scmp.ne.s32.totalorder %s154, %s155
    %p167 = scmp.eq.s32.totalorder %s19, 1
    %p168 = por %p166, %p167
    %p170 = scmp.ne.s32.totalorder %s155, %s169
    %p171 = scmp.eq.s32.totalorder %s19, 0
    %p172 = por %p170, %p171
    %s173 = ssub.s32 %s13, %s20
    %p174 = scmp.eq.s32.totalorder %s173, 0
    %s176 = sadd.s32 %s175, 1
    %s177 = scalar_select %p174, %s175, %s176
    %p180 = pneg %p174
    %p181 = scmp.eq.s32.totalorder %s13, 1
    %p182 = por %p180, %p181
    %p183 = scmp.ne.s32.totalorder %s175, %s178
    %p184 = scmp.eq.s32.totalorder %s13, 0
    %p185 = por %p183, %p184
    %p186 = scmp.ne.s32.totalorder %s175, %s178
    %p187 = scmp.eq.s32.totalorder %s18, 1
    %p188 = por %p186, %p187
    %p189 = scmp.ne.s32.totalorder %s178, %s179
    %p190 = scmp.eq.s32.totalorder %s18, 0
    %p191 = por %p189, %p190
    %p192 = scmp.ne.s32.totalorder %s178, %s179
    %p193 = scmp.eq.s32.totalorder %s19, 1
    %p194 = por %p192, %p193
    %p196 = scmp.ne.s32.totalorder %s179, %s195
    %p197 = scmp.eq.s32.totalorder %s19, 0
    %p198 = por %p196, %p197
    %p199 = scmp.le.s32.totalorder 1, %s13
    %p200 = scmp.lt.s32.totalorder %s13, 3
    %p201 = pnand %p199, %p200
    %p202 = pneg %p201
    // Predicated region
    $region9: #{_lambda_.1} parent=5 // pred_check
      _
    $region10: #{_lambda_.1} parent=5 // pred_check_branch
      %204 = sbr.rel (%p201) target = $region12
    $region11: #{_lambda_.1} parent=5 // pred_region
      %s205 = ssub.s32 %s13, 1
      // Predicated region
      $region13: #{_lambda_.1} parent=11 // pred_check
        %p206 = pneg %p60
      $region14: #{_lambda_.1} parent=11 // pred_check_branch
        %208 = sbr.rel (%p206) target = $region16
      $region15: #{_lambda_.1} parent=11 // pred_region
        _
      $region16: #{_lambda_.1} parent=11 // pred_fallthru
        _
      // Predicated region
      $region17: #{_lambda_.1} parent=11 // pred_check
        %p209 = pneg %p81
      $region18: #{_lambda_.1} parent=11 // pred_check_branch
        %211 = sbr.rel (%p209) target = $region20
      $region19: #{_lambda_.1} parent=11 // pred_region
        _
      $region20: #{_lambda_.1} parent=11 // pred_fallthru
        _
      // Predicated region
      $region21: #{_lambda_.1} parent=11 // pred_check
        %p212 = pneg %p102
      $region22: #{_lambda_.1} parent=11 // pred_check_branch
        %214 = sbr.rel (%p212) target = $region24
      $region23: #{_lambda_.1} parent=11 // pred_region
        _
      $region24: #{_lambda_.1} parent=11 // pred_fallthru
        _
      // Predicated region
      $region25: #{_lambda_.1} parent=11 // pred_check
        %p215 = pneg %p123
      $region26: #{_lambda_.1} parent=11 // pred_check_branch
        %217 = sbr.rel (%p215) target = $region28
      $region27: #{_lambda_.1} parent=11 // pred_region
        _
      $region28: #{_lambda_.1} parent=11 // pred_fallthru
        _
      // Predicated region
      $region29: #{_lambda_.1} parent=11 // pred_check
        %p218 = pneg %p144
      $region30: #{_lambda_.1} parent=11 // pred_check_branch
        %220 = sbr.rel (%p218) target = $region32
      $region31: #{_lambda_.1} parent=11 // pred_region
        _
      $region32: #{_lambda_.1} parent=11 // pred_fallthru
        _
      // Predicated region
      $region33: #{_lambda_.1} parent=11 // pred_check
        %p221 = pneg %p165
      $region34: #{_lambda_.1} parent=11 // pred_check_branch
        %223 = sbr.rel (%p221) target = $region36
      $region35: #{_lambda_.1} parent=11 // pred_region
        _
      $region36: #{_lambda_.1} parent=11 // pred_fallthru
        _
    $region12: #{_lambda_.1} parent=5 // pred_fallthru
      _
    %p224 = scmp.lt.s32.totalorder %s13, 2
    // Predicated region
    $region37: #{_lambda_.1} parent=5 // pred_check
      %p225 = pneg %p224
    $region38: #{_lambda_.1} parent=5 // pred_check_branch
      %227 = sbr.rel (%p225) target = $region40
    $region39: #{_lambda_.1} parent=5 // pred_region
      // Predicated region
      $region41: #{_lambda_.1} parent=39 // pred_check
        %p228 = pneg %p33
      $region42: #{_lambda_.1} parent=39 // pred_check_branch
        %230 = sbr.rel (%p228) target = $region44
      $region43: #{_lambda_.1} parent=39 // pred_region
        %s231 = smul.u32 32, %s13
        %p232 = scmp.lt.s32.totalorder %s231, 63
        %s233 = scalar_select %p232, %s231, 63
        %s234 = smul.addr %s233, 8
        %s235 = scalar_lea.vmem %s0, %s234
        %s236 = smul.u32 32, %s13
      $region44: #{_lambda_.1} parent=39 // pred_fallthru
        _
    $region40: #{_lambda_.1} parent=5 // pred_fallthru
      _
    %p237 = scmp.le.s32.totalorder 1, %s13
    %p238 = scmp.lt.s32.totalorder %s13, 3
    %p239 = pnand %p237, %p238
    %p240 = pneg %p239
    // Predicated region
    $region45: #{_lambda_.1} parent=5 // pred_check
      _
    $region46: #{_lambda_.1} parent=5 // pred_check_branch
      %242 = sbr.rel (%p239) target = $region48
    $region47: #{_lambda_.1} parent=5 // pred_region
      %s243 = ssub.s32 %s13, 1
      %s244 = smul.u32 32, %s18
      %p245 = scmp.lt.s32.totalorder %s244, 63
      %s246 = scalar_select %p245, %s244, 63
      %s247 = smul.addr %s246, 8
      %s248 = scalar_lea.vmem %s0, %s247
      %p249 = pneg %p39
      %p250 = pneg %p36
      %p251 = pneg %p60
      %p252 = pneg %p57
      %p253 = pneg %p81
      %p254 = pneg %p78
      %p255 = pneg %p102
      %p256 = pneg %p99
      %p257 = pneg %p123
      %p258 = pneg %p120
      %p259 = pneg %p144
      %p260 = pneg %p141
      %p261 = pneg %p165
      %p262 = pneg %p162
      %p263 = pneg %p191
      %p264 = pneg %p188
      %s265 = smul.u32 32, %s18
      %p266 = scmp.lt.s32.totalorder %s265, 63
      %s267 = scalar_select %p266, %s265, 63
      %s268 = smul.addr %s267, 4
      %s269 = scalar_lea.vmem %s7, %s268
      %s270 = smul.u32 32, %s18
      %p271 = scmp.lt.s32.totalorder %s270, 63
      %s272 = scalar_select %p271, %s270, 63
      %s273 = smul.addr %s272, 8
      %s274 = scalar_lea.vmem %s0, %s273
      %s275 = smul.u32 32, %s18
      %s276 = smul.u32 32, %s18
      %p277 = scmp.lt.s32.totalorder %s276, 63
      %s278 = scalar_select %p277, %s276, 63
      %s279 = smul.addr %s278, 4
      %s280 = scalar_lea.vmem %s7, %s279
      %s281 = smul.u32 32, %s18
      %v283 = vld [vmem:[%s274] sm:$0xff]
      %v284 = vld [vmem:[%s274 + $0x8] sm:$0xff]
      %v285 = vld [vmem:[%s274 + $0x10] sm:$0xff]
      %v286 = vld [vmem:[%s274 + $0x18] sm:$0xff]
      %v287 = vld [vmem:[%s274 + $0x20] sm:$0xff]
      %v288 = vld [vmem:[%s274 + $0x28] sm:$0xff]
      %v289 = vld [vmem:[%s274 + $0x30] sm:$0xff]
      %v290 = vld [vmem:[%s274 + $0x38] sm:$0xff]
      %v291 = vld [vmem:[%s274 + $0x40] sm:$0xff]
      %v292 = vld [vmem:[%s274 + $0x48] sm:$0xff]
      %v293 = vld [vmem:[%s274 + $0x50] sm:$0xff]
      %v294 = vld [vmem:[%s274 + $0x58] sm:$0xff]
      %v295 = vld [vmem:[%s274 + $0x60] sm:$0xff]
      %v296 = vld [vmem:[%s274 + $0x68] sm:$0xff]
      %v297 = vld [vmem:[%s274 + $0x70] sm:$0xff]
      %v298 = vld [vmem:[%s274 + $0x78] sm:$0xff]
      %v299 = vld [vmem:[%s274 + $0x80] sm:$0xff]
      %v300 = vld [vmem:[%s274 + $0x88] sm:$0xff]
      %v301 = vld [vmem:[%s274 + $0x90] sm:$0xff]
      %v302 = vld [vmem:[%s274 + $0x98] sm:$0xff]
      %v303 = vld [vmem:[%s274 + $0xa0] sm:$0xff]
      %v304 = vld [vmem:[%s274 + $0xa8] sm:$0xff]
      %v305 = vld [vmem:[%s274 + $0xb0] sm:$0xff]
      %v306 = vld [vmem:[%s274 + $0xb8] sm:$0xff]
      %v307 = vld [vmem:[%s274 + $0xc0] sm:$0xff]
      %v308 = vld [vmem:[%s274 + $0xc8] sm:$0xff]
      %v309 = vld [vmem:[%s274 + $0xd0] sm:$0xff]
      %v310 = vld [vmem:[%s274 + $0xd8] sm:$0xff]
      %v311 = vld [vmem:[%s274 + $0xe0] sm:$0xff]
      %v312 = vld [vmem:[%s274 + $0xe8] sm:$0xff]
      %v313 = vld [vmem:[%s274 + $0xf0] sm:$0xff]
      %v314 = vld [vmem:[%s274 + $0xf8] sm:$0xff]
      %v315 = vld [vmem:[%s1] sm:$0xff]
      %v316 = vld [vmem:[%s1 + $0x8] sm:$0xff]
      %v317 = vld [vmem:[%s1 + $0x10] sm:$0xff]
      %v318 = vld [vmem:[%s1 + $0x18] sm:$0xff]
      %v319 = vld [vmem:[%s2] sm:$0x1]
      %v321 = vlaneseq
      %v322 = vshrl.u32 %v321, 7
      %v323 = vsub.s32 0, %v322
      %v324 = vrot.slane %v319, %v323
      %vm326 = vcmask 261120
      %v328 = vsel %vm326, %v283, 0
      %v331 = vsel %vm326, %v284, 0
      %v334 = vsel %vm326, %v285, 0
      %v337 = vsel %vm326, %v286, 0
      %v340 = vsel %vm326, %v287, 0
      %v343 = vsel %vm326, %v288, 0
      %v346 = vsel %vm326, %v289, 0
      %v349 = vsel %vm326, %v290, 0
      %v352 = vsel %vm326, %v291, 0
      %v355 = vsel %vm326, %v292, 0
      %v358 = vsel %vm326, %v293, 0
      %v361 = vsel %vm326, %v294, 0
      %v364 = vsel %vm326, %v295, 0
      %v367 = vsel %vm326, %v296, 0
      %v370 = vsel %vm326, %v297, 0
      %v373 = vsel %vm326, %v298, 0
      %v376 = vsel %vm326, %v299, 0
      %v379 = vsel %vm326, %v300, 0
      %v382 = vsel %vm326, %v301, 0
      %v385 = vsel %vm326, %v302, 0
      %v388 = vsel %vm326, %v303, 0
      %v391 = vsel %vm326, %v304, 0
      %v394 = vsel %vm326, %v305, 0
      %v397 = vsel %vm326, %v306, 0
      %v400 = vsel %vm326, %v307, 0
      %v403 = vsel %vm326, %v308, 0
      %v406 = vsel %vm326, %v309, 0
      %v409 = vsel %vm326, %v310, 0
      %v412 = vsel %vm326, %v311, 0
      %v415 = vsel %vm326, %v312, 0
      %v418 = vsel %vm326, %v313, 0
      %v421 = vsel %vm326, %v314, 0
      %423 = vmatprep.subr.mxu0 0.0
      %424 = vmatpush1.msra.mxu0 %v315
      %425 = vmatprep.subr.mxu0 0.0
      %426 = vmatpush1.msra.mxu0 %v316
      %427 = vmatprep.subr.mxu0 0.0
      %428 = vmatpush1.msra.mxu0 %v317
      %429 = vmatprep.subr.mxu0 0.0
      %430 = vmatpush1.msra.mxu0 %v318
      %431 = vmatprep.subr.mxu0 0.0
      %432 = vmatpush1.msra.mxu0 0.0
      %433 = vmatprep.subr.mxu0 0.0
      %434 = vmatpush1.msra.mxu0 0.0
      %435 = vmatprep.subr.mxu0 0.0
      %436 = vmatpush1.msra.mxu0 0.0
      %437 = vmatprep.subr.mxu0 0.0
      %438 = vmatpush1.msra.mxu0 0.0
      %439 = vmatprep.subr.mxu0 0.0
      %440 = vmatpush1.msra.mxu0 0.0
      %441 = vmatprep.subr.mxu0 0.0
      %442 = vmatpush1.msra.mxu0 0.0
      %443 = vmatprep.subr.mxu0 0.0
      %444 = vmatpush1.msra.mxu0 0.0
      %445 = vmatprep.subr.mxu0 0.0
      %446 = vmatpush1.msra.mxu0 0.0
      %447 = vmatprep.subr.mxu0 0.0
      %448 = vmatpush1.msra.mxu0 0.0
      %449 = vmatprep.subr.mxu0 0.0
      %450 = vmatpush1.msra.mxu0 0.0
      %451 = vmatprep.subr.mxu0 0.0
      %452 = vmatpush1.msra.mxu0 0.0
      %453 = vmatprep.subr.mxu0 0.0
      %454 = vmatpush1.msra.mxu0 0.0
      %455 = vmatprep.subr.mxu0 0.0
      %456 = vmatpush1.msra.mxu0 0.0
      %457 = vmatprep.subr.mxu0 0.0
      %458 = vmatpush1.msra.mxu0 0.0
      %459 = vmatprep.subr.mxu0 0.0
      %460 = vmatpush1.msra.mxu0 0.0
      %461 = vmatprep.subr.mxu0 0.0
      %462 = vmatpush1.msra.mxu0 0.0
      %463 = vmatprep.subr.mxu0 0.0
      %464 = vmatpush1.msra.mxu0 0.0
      %465 = vmatprep.subr.mxu0 0.0
      %466 = vmatpush1.msra.mxu0 0.0
      %467 = vmatprep.subr.mxu0 0.0
      %468 = vmatpush1.msra.mxu0 0.0
      %469 = vmatprep.subr.mxu0 0.0
      %470 = vmatpush1.msra.mxu0 0.0
      %471 = vmatprep.subr.mxu0 0.0
      %472 = vmatpush1.msra.mxu0 0.0
      %473 = vmatprep.subr.mxu0 0.0
      %474 = vmatpush1.msra.mxu0 0.0
      %475 = vmatprep.subr.mxu0 0.0
      %476 = vmatpush1.msra.mxu0 0.0
      %477 = vmatprep.subr.mxu0 0.0
      %478 = vmatpush1.msra.mxu0 0.0
      %479 = vmatprep.subr.mxu0 0.0
      %480 = vmatpush1.msra.mxu0 0.0
      %481 = vmatprep.subr.mxu0 0.0
      %482 = vmatpush1.msra.mxu0 0.0
      %483 = vmatprep.subr.mxu0 0.0
      %484 = vmatpush1.msra.mxu0 0.0
      %485 = vmatprep.subr.mxu0 0.0
      %486 = vmatpush1.msra.mxu0 0.0
      %487 = vmatprep.mubr.f32.mxu0 0.0
      %488 = vmatmul.mubr.f32.gmra.mrb[0].mxu0 %v328
      %v489 = vpop.f32.mrb[0].mxu0
      %v490 = vadd.f32 %v324, %v489
      %v491 = vpop.f32.mrb[0].mxu0
      %492 = vmatprep.mubr.f32.mxu0 0.0
      %493 = vmatmul.mubr.f32.gmra.mrb[0].mxu0 %v331
      %v494 = vpop.f32.mrb[0].mxu0
      %v495 = vadd.f32 %v324, %v494
      %v496 = vpop.f32.mrb[0].mxu0
      %497 = vmatprep.mubr.f32.mxu0 0.0
      %498 = vmatmul.mubr.f32.gmra.mrb[0].mxu0 %v334
      %v499 = vpop.f32.mrb[0].mxu0
      %v500 = vadd.f32 %v324, %v499
      %v501 = vpop.f32.mrb[0].mxu0
      %502 = vmatprep.mubr.f32.mxu0 0.0
      %503 = vmatmul.mubr.f32.gmra.mrb[0].mxu0 %v337
      %v504 = vpop.f32.mrb[0].mxu0
      %v505 = vadd.f32 %v324, %v504
      %v506 = vpop.f32.mrb[0].mxu0
      %507 = vmatprep.mubr.f32.mxu0 0.0
      %508 = vmatmul.mubr.f32.gmra.mrb[0].mxu0 %v340
      %v509 = vpop.f32.mrb[0].mxu0
      %v510 = vadd.f32 %v324, %v509
      %v511 = vpop.f32.mrb[0].mxu0
      %512 = vmatprep.mubr.f32.mxu0 0.0
      %513 = vmatmul.mubr.f32.gmra.mrb[0].mxu0 %v343
      %v514 = vpop.f32.mrb[0].mxu0
      %v515 = vadd.f32 %v324, %v514
      %v516 = vpop.f32.mrb[0].mxu0
      %517 = vmatprep.mubr.f32.mxu0 0.0
      %518 = vmatmul.mubr.f32.gmra.mrb[0].mxu0 %v346
      %v519 = vpop.f32.mrb[0].mxu0
      %v520 = vadd.f32 %v324, %v519
      %v521 = vpop.f32.mrb[0].mxu0
      %522 = vmatprep.mubr.f32.mxu0 0.0
      %523 = vmatmul.mubr.f32.gmra.mrb[0].mxu0 %v349
      %v524 = vpop.f32.mrb[0].mxu0
      %v525 = vadd.f32 %v324, %v524
      %v526 = vpop.f32.mrb[0].mxu0
      %527 = vmatprep.mubr.f32.mxu0 0.0
      %528 = vmatmul.mubr.f32.gmra.mrb[0].mxu0 %v352
      %v529 = vpop.f32.mrb[0].mxu0
      %v530 = vadd.f32 %v324, %v529
      %v531 = vpop.f32.mrb[0].mxu0
      %532 = vmatprep.mubr.f32.mxu0 0.0
      %533 = vmatmul.mubr.f32.gmra.mrb[0].mxu0 %v355
      %v534 = vpop.f32.mrb[0].mxu0
      %v535 = vadd.f32 %v324, %v534
      %v536 = vpop.f32.mrb[0].mxu0
      %537 = vmatprep.mubr.f32.mxu0 0.0
      %538 = vmatmul.mubr.f32.gmra.mrb[0].mxu0 %v358
      %v539 = vpop.f32.mrb[0].mxu0
      %v540 = vadd.f32 %v324, %v539
      %v541 = vpop.f32.mrb[0].mxu0
      %542 = vmatprep.mubr.f32.mxu0 0.0
      %543 = vmatmul.mubr.f32.gmra.mrb[0].mxu0 %v361
      %v544 = vpop.f32.mrb[0].mxu0
      %v545 = vadd.f32 %v324, %v544
      %v546 = vpop.f32.mrb[0].mxu0
      %547 = vmatprep.mubr.f32.mxu0 0.0
      %548 = vmatmul.mubr.f32.gmra.mrb[0].mxu0 %v364
      %v549 = vpop.f32.mrb[0].mxu0
      %v550 = vadd.f32 %v324, %v549
      %v551 = vpop.f32.mrb[0].mxu0
      %552 = vmatprep.mubr.f32.mxu0 0.0
      %553 = vmatmul.mubr.f32.gmra.mrb[0].mxu0 %v367
      %v554 = vpop.f32.mrb[0].mxu0
      %v555 = vadd.f32 %v324, %v554
      %v556 = vpop.f32.mrb[0].mxu0
      %557 = vmatprep.mubr.f32.mxu0 0.0
      %558 = vmatmul.mubr.f32.gmra.mrb[0].mxu0 %v370
      %v559 = vpop.f32.mrb[0].mxu0
      %v560 = vadd.f32 %v324, %v559
      %v561 = vpop.f32.mrb[0].mxu0
      %562 = vmatprep.mubr.f32.mxu0 0.0
      %563 = vmatmul.mubr.f32.gmra.mrb[0].mxu0 %v373
      %v564 = vpop.f32.mrb[0].mxu0
      %v565 = vadd.f32 %v324, %v564
      %v566 = vpop.f32.mrb[0].mxu0
      %567 = vmatprep.mubr.f32.mxu0 0.0
      %568 = vmatmul.mubr.f32.gmra.mrb[0].mxu0 %v376
      %v569 = vpop.f32.mrb[0].mxu0
      %v570 = vadd.f32 %v324, %v569
      %v571 = vpop.f32.mrb[0].mxu0
      %572 = vmatprep.mubr.f32.mxu0 0.0
      %573 = vmatmul.mubr.f32.gmra.mrb[0].mxu0 %v379
      %v574 = vpop.f32.mrb[0].mxu0
      %v575 = vadd.f32 %v324, %v574
      %v576 = vpop.f32.mrb[0].mxu0
      %577 = vmatprep.mubr.f32.mxu0 0.0
      %578 = vmatmul.mubr.f32.gmra.mrb[0].mxu0 %v382
      %v579 = vpop.f32.mrb[0].mxu0
      %v580 = vadd.f32 %v324, %v579
      %v581 = vpop.f32.mrb[0].mxu0
      %582 = vmatprep.mubr.f32.mxu0 0.0
      %583 = vmatmul.mubr.f32.gmra.mrb[0].mxu0 %v385
      %v584 = vpop.f32.mrb[0].mxu0
      %v585 = vadd.f32 %v324, %v584
      %v586 = vpop.f32.mrb[0].mxu0
      %587 = vmatprep.mubr.f32.mxu0 0.0
      %588 = vmatmul.mubr.f32.gmra.mrb[0].mxu0 %v388
      %v589 = vpop.f32.mrb[0].mxu0
      %v590 = vadd.f32 %v324, %v589
      %v591 = vpop.f32.mrb[0].mxu0
      %592 = vmatprep.mubr.f32.mxu0 0.0
      %593 = vmatmul.mubr.f32.gmra.mrb[0].mxu0 %v391
      %v594 = vpop.f32.mrb[0].mxu0
      %v595 = vadd.f32 %v324, %v594
      %v596 = vpop.f32.mrb[0].mxu0
      %597 = vmatprep.mubr.f32.mxu0 0.0
      %598 = vmatmul.mubr.f32.gmra.mrb[0].mxu0 %v394
      %v599 = vpop.f32.mrb[0].mxu0
      %v600 = vadd.f32 %v324, %v599
      %v601 = vpop.f32.mrb[0].mxu0
      %602 = vmatprep.mubr.f32.mxu0 0.0
      %603 = vmatmul.mubr.f32.gmra.mrb[0].mxu0 %v397
      %v604 = vpop.f32.mrb[0].mxu0
      %v605 = vadd.f32 %v324, %v604
      %v606 = vpop.f32.mrb[0].mxu0
      %607 = vmatprep.mubr.f32.mxu0 0.0
      %608 = vmatmul.mubr.f32.gmra.mrb[0].mxu0 %v400
      %v609 = vpop.f32.mrb[0].mxu0
      %v610 = vadd.f32 %v324, %v609
      %v611 = vpop.f32.mrb[0].mxu0
      %612 = vmatprep.mubr.f32.mxu0 0.0
      %613 = vmatmul.mubr.f32.gmra.mrb[0].mxu0 %v403
      %v614 = vpop.f32.mrb[0].mxu0
      %v615 = vadd.f32 %v324, %v614
      %v616 = vpop.f32.mrb[0].mxu0
      %617 = vmatprep.mubr.f32.mxu0 0.0
      %618 = vmatmul.mubr.f32.gmra.mrb[0].mxu0 %v406
      %v619 = vpop.f32.mrb[0].mxu0
      %v620 = vadd.f32 %v324, %v619
      %v621 = vpop.f32.mrb[0].mxu0
      %622 = vmatprep.mubr.f32.mxu0 0.0
      %623 = vmatmul.mubr.f32.gmra.mrb[0].mxu0 %v409
      %v624 = vpop.f32.mrb[0].mxu0
      %v625 = vadd.f32 %v324, %v624
      %v626 = vpop.f32.mrb[0].mxu0
      %627 = vmatprep.mubr.f32.mxu0 0.0
      %628 = vmatmul.mubr.f32.gmra.mrb[0].mxu0 %v412
      %v629 = vpop.f32.mrb[0].mxu0
      %v630 = vadd.f32 %v324, %v629
      %v631 = vpop.f32.mrb[0].mxu0
      %632 = vmatprep.mubr.f32.mxu0 0.0
      %633 = vmatmul.mubr.f32.gmra.mrb[0].mxu0 %v415
      %v634 = vpop.f32.mrb[0].mxu0
      %v635 = vadd.f32 %v324, %v634
      %v636 = vpop.f32.mrb[0].mxu0
      %637 = vmatprep.mubr.f32.mxu0 0.0
      %638 = vmatmul.mubr.f32.gmra.mrb[0].mxu0 %v418
      %v639 = vpop.f32.mrb[0].mxu0
      %v640 = vadd.f32 %v324, %v639
      %v641 = vpop.f32.mrb[0].mxu0
      %642 = vmatprep.mubr.f32.mxu0 0.0
      %643 = vmatmul.mubr.f32.gmra.mrb[0].mxu0 %v421
      %v644 = vpop.f32.mrb[0].mxu0
      %v645 = vadd.f32 %v324, %v644
      %v646 = vpop.f32.mrb[0].mxu0
      %647 = vdwg.mxu0
      %v648 = vmax.f32 %v490, 0.0
      %v649 = vmax.f32 %v495, 0.0
      %v650 = vmax.f32 %v500, 0.0
      %v651 = vmax.f32 %v505, 0.0
      %v652 = vmax.f32 %v510, 0.0
      %v653 = vmax.f32 %v515, 0.0
      %v654 = vmax.f32 %v520, 0.0
      %v655 = vmax.f32 %v525, 0.0
      %v656 = vmax.f32 %v530, 0.0
      %v657 = vmax.f32 %v535, 0.0
      %v658 = vmax.f32 %v540, 0.0
      %v659 = vmax.f32 %v545, 0.0
      %v660 = vmax.f32 %v550, 0.0
      %v661 = vmax.f32 %v555, 0.0
      %v662 = vmax.f32 %v560, 0.0
      %v663 = vmax.f32 %v565, 0.0
      %v664 = vmax.f32 %v570, 0.0
      %v665 = vmax.f32 %v575, 0.0
      %v666 = vmax.f32 %v580, 0.0
      %v667 = vmax.f32 %v585, 0.0
      %v668 = vmax.f32 %v590, 0.0
      %v669 = vmax.f32 %v595, 0.0
      %v670 = vmax.f32 %v600, 0.0
      %v671 = vmax.f32 %v605, 0.0
      %v672 = vmax.f32 %v610, 0.0
      %v673 = vmax.f32 %v615, 0.0
      %v674 = vmax.f32 %v620, 0.0
      %v675 = vmax.f32 %v625, 0.0
      %v676 = vmax.f32 %v630, 0.0
      %v677 = vmax.f32 %v635, 0.0
      %v678 = vmax.f32 %v640, 0.0
      %v679 = vmax.f32 %v645, 0.0
      %v680 = vpack.c.bf16 %v649, %v648
      %v681 = vpack.c.bf16 %v651, %v650
      %v682 = vpack.c.bf16 %v653, %v652
      %v683 = vpack.c.bf16 %v655, %v654
      %v684 = vpack.c.bf16 %v657, %v656
      %v685 = vpack.c.bf16 %v659, %v658
      %v686 = vpack.c.bf16 %v661, %v660
      %v687 = vpack.c.bf16 %v663, %v662
      %v688 = vpack.c.bf16 %v665, %v664
      %v689 = vpack.c.bf16 %v667, %v666
      %v690 = vpack.c.bf16 %v669, %v668
      %v691 = vpack.c.bf16 %v671, %v670
      %v692 = vpack.c.bf16 %v673, %v672
      %v693 = vpack.c.bf16 %v675, %v674
      %v694 = vpack.c.bf16 %v677, %v676
      %v695 = vpack.c.bf16 %v679, %v678
      %v696 = vld [vmem:[%s3] sm:$0xf]
      %v697 = vld [vmem:[%s3 + $0x4] sm:$0xf]
      %v698 = vld [vmem:[%s3 + $0x8] sm:$0xf]
      %v699 = vld [vmem:[%s3 + $0xc] sm:$0xf]
      %v700 = vld [vmem:[%s3 + $0x10] sm:$0xf]
      %v701 = vld [vmem:[%s3 + $0x14] sm:$0xf]
      %v702 = vld [vmem:[%s3 + $0x18] sm:$0xf]
      %v703 = vld [vmem:[%s3 + $0x1c] sm:$0xf]
      %v704 = vld [vmem:[%s3 + $0x20] sm:$0xf]
      %v705 = vld [vmem:[%s3 + $0x24] sm:$0xf]
      %v706 = vld [vmem:[%s3 + $0x28] sm:$0xf]
      %v707 = vld [vmem:[%s3 + $0x2c] sm:$0xf]
      %v708 = vld [vmem:[%s3 + $0x30] sm:$0xf]
      %v709 = vld [vmem:[%s3 + $0x34] sm:$0xf]
      %v710 = vld [vmem:[%s3 + $0x38] sm:$0xf]
      %v711 = vld [vmem:[%s3 + $0x3c] sm:$0xf]
      %v712 = vld [vmem:[%s4] sm:$0x1]
      %v714 = vlaneseq
      %v715 = vshrl.u32 %v714, 7
      %v716 = vsub.s32 0, %v715
      %v717 = vrot.slane %v712, %v716
      %v735 = vunpack.c.l.b16 %v696
      %v736 = vunpack.c.l.b16 %v697
      %v737 = vunpack.c.l.b16 %v698
      %v738 = vunpack.c.l.b16 %v699
      %v739 = vunpack.c.l.b16 %v700
      %v740 = vunpack.c.l.b16 %v701
      %v741 = vunpack.c.l.b16 %v702
      %v742 = vunpack.c.l.b16 %v703
      %v743 = vunpack.c.l.b16 %v704
      %v744 = vunpack.c.l.b16 %v705
      %v745 = vunpack.c.l.b16 %v706
      %v746 = vunpack.c.l.b16 %v707
      %v747 = vunpack.c.l.b16 %v708
      %v748 = vunpack.c.l.b16 %v709
      %v749 = vunpack.c.l.b16 %v710
      %v750 = vunpack.c.l.b16 %v711
      %v751 = vpack.c.b16 %v736, %v735
      %v752 = vpack.c.b16 %v738, %v737
      %v753 = vpack.c.b16 %v740, %v739
      %v754 = vpack.c.b16 %v742, %v741
      %v755 = vpack.c.b16 %v744, %v743
      %v756 = vpack.c.b16 %v746, %v745
      %v757 = vpack.c.b16 %v748, %v747
      %v758 = vpack.c.b16 %v750, %v749
      %767 = vmatprep.subr.bf16.mxu0 0
      %768 = vmatpush1.bf16.msra.mxu0 %v751
      %769 = vmatprep.subr.bf16.mxu0 0
      %770 = vmatpush1.bf16.msra.mxu0 %v752
      %771 = vmatprep.subr.bf16.mxu0 0
      %772 = vmatpush1.bf16.msra.mxu0 %v753
      %773 = vmatprep.subr.bf16.mxu0 0
      %774 = vmatpush1.bf16.msra.mxu0 %v754
      %775 = vmatprep.subr.bf16.mxu0 0
      %776 = vmatpush1.bf16.msra.mxu0 %v755
      %777 = vmatprep.subr.bf16.mxu0 0
      %778 = vmatpush1.bf16.msra.mxu0 %v756
      %779 = vmatprep.subr.bf16.mxu0 0
      %780 = vmatpush1.bf16.msra.mxu0 %v757
      %781 = vmatprep.subr.bf16.mxu0 0
      %782 = vmatpush1.bf16.msra.mxu0 %v758
      %783 = vmatprep.subr.bf16.mxu0 0
      %784 = vmatpush1.bf16.msra.mxu0 0
      %785 = vmatprep.subr.bf16.mxu0 0
      %786 = vmatpush1.bf16.msra.mxu0 0
      %787 = vmatprep.subr.bf16.mxu0 0
      %788 = vmatpush1.bf16.msra.mxu0 0
      %789 = vmatprep.subr.bf16.mxu0 0
      %790 = vmatpush1.bf16.msra.mxu0 0
      %791 = vmatprep.subr.bf16.mxu0 0
      %792 = vmatpush1.bf16.msra.mxu0 0
      %793 = vmatprep.subr.bf16.mxu0 0
      %794 = vmatpush1.bf16.msra.mxu0 0
      %795 = vmatprep.subr.bf16.mxu0 0
      %796 = vmatpush1.bf16.msra.mxu0 0
      %797 = vmatprep.subr.bf16.mxu0 0
      %798 = vmatpush1.bf16.msra.mxu0 0
      %799 = vmatprep.mubr.bf16.mxu0 0
      %800 = vmatmul.mubr.bf16.gmra.mrb[0].mxu0 %v680
      %v801 = vpop.f32.mrb[0].mxu0
      %v802 = vadd.f32 %v717, %v801
      %v803 = vpop.f32.mrb[0].mxu0
      %v804 = vpop.f32.mrb[0].mxu0
      %v805 = vadd.f32 %v717, %v804
      %v806 = vpop.f32.mrb[0].mxu0
      %807 = vmatprep.mubr.bf16.mxu0 0
      %808 = vmatmul.mubr.bf16.gmra.mrb[0].mxu0 %v681
      %v809 = vpop.f32.mrb[0].mxu0
      %v810 = vadd.f32 %v717, %v809
      %v811 = vpop.f32.mrb[0].mxu0
      %v812 = vpop.f32.mrb[0].mxu0
      %v813 = vadd.f32 %v717, %v812
      %v814 = vpop.f32.mrb[0].mxu0
      %815 = vmatprep.mubr.bf16.mxu0 0
      %816 = vmatmul.mubr.bf16.gmra.mrb[0].mxu0 %v682
      %v817 = vpop.f32.mrb[0].mxu0
      %v818 = vadd.f32 %v717, %v817
      %v819 = vpop.f32.mrb[0].mxu0
      %v820 = vpop.f32.mrb[0].mxu0
      %v821 = vadd.f32 %v717, %v820
      %v822 = vpop.f32.mrb[0].mxu0
      %823 = vmatprep.mubr.bf16.mxu0 0
      %824 = vmatmul.mubr.bf16.gmra.mrb[0].mxu0 %v683
      %v825 = vpop.f32.mrb[0].mxu0
      %v826 = vadd.f32 %v717, %v825
      %v827 = vpop.f32.mrb[0].mxu0
      %v828 = vpop.f32.mrb[0].mxu0
      %v829 = vadd.f32 %v717, %v828
      %v830 = vpop.f32.mrb[0].mxu0
      %831 = vmatprep.mubr.bf16.mxu0 0
      %832 = vmatmul.mubr.bf16.gmra.mrb[0].mxu0 %v684
      %v833 = vpop.f32.mrb[0].mxu0
      %v834 = vadd.f32 %v717, %v833
      %v835 = vpop.f32.mrb[0].mxu0
      %v836 = vpop.f32.mrb[0].mxu0
      %v837 = vadd.f32 %v717, %v836
      %v838 = vpop.f32.mrb[0].mxu0
      %839 = vmatprep.mubr.bf16.mxu0 0
      %840 = vmatmul.mubr.bf16.gmra.mrb[0].mxu0 %v685
      %v841 = vpop.f32.mrb[0].mxu0
      %v842 = vadd.f32 %v717, %v841
      %v843 = vpop.f32.mrb[0].mxu0
      %v844 = vpop.f32.mrb[0].mxu0
      %v845 = vadd.f32 %v717, %v844
      %v846 = vpop.f32.mrb[0].mxu0
      %847 = vmatprep.mubr.bf16.mxu0 0
      %848 = vmatmul.mubr.bf16.gmra.mrb[0].mxu0 %v686
      %v849 = vpop.f32.mrb[0].mxu0
      %v850 = vadd.f32 %v717, %v849
      %v851 = vpop.f32.mrb[0].mxu0
      %v852 = vpop.f32.mrb[0].mxu0
      %v853 = vadd.f32 %v717, %v852
      %v854 = vpop.f32.mrb[0].mxu0
      %855 = vmatprep.mubr.bf16.mxu0 0
      %856 = vmatmul.mubr.bf16.gmra.mrb[0].mxu0 %v687
      %v857 = vpop.f32.mrb[0].mxu0
      %v858 = vadd.f32 %v717, %v857
      %v859 = vpop.f32.mrb[0].mxu0
      %v860 = vpop.f32.mrb[0].mxu0
      %v861 = vadd.f32 %v717, %v860
      %v862 = vpop.f32.mrb[0].mxu0
      %863 = vmatprep.mubr.bf16.mxu0 0
      %864 = vmatmul.mubr.bf16.gmra.mrb[0].mxu0 %v688
      %v865 = vpop.f32.mrb[0].mxu0
      %v866 = vadd.f32 %v717, %v865
      %v867 = vpop.f32.mrb[0].mxu0
      %v868 = vpop.f32.mrb[0].mxu0
      %v869 = vadd.f32 %v717, %v868
      %v870 = vpop.f32.mrb[0].mxu0
      %871 = vmatprep.mubr.bf16.mxu0 0
      %872 = vmatmul.mubr.bf16.gmra.mrb[0].mxu0 %v689
      %v873 = vpop.f32.mrb[0].mxu0
      %v874 = vadd.f32 %v717, %v873
      %v875 = vpop.f32.mrb[0].mxu0
      %v876 = vpop.f32.mrb[0].mxu0
      %v877 = vadd.f32 %v717, %v876
      %v878 = vpop.f32.mrb[0].mxu0
      %879 = vmatprep.mubr.bf16.mxu0 0
      %880 = vmatmul.mubr.bf16.gmra.mrb[0].mxu0 %v690
      %v881 = vpop.f32.mrb[0].mxu0
      %v882 = vadd.f32 %v717, %v881
      %v883 = vpop.f32.mrb[0].mxu0
      %v884 = vpop.f32.mrb[0].mxu0
      %v885 = vadd.f32 %v717, %v884
      %v886 = vpop.f32.mrb[0].mxu0
      %887 = vmatprep.mubr.bf16.mxu0 0
      %888 = vmatmul.mubr.bf16.gmra.mrb[0].mxu0 %v691
      %v889 = vpop.f32.mrb[0].mxu0
      %v890 = vadd.f32 %v717, %v889
      %v891 = vpop.f32.mrb[0].mxu0
      %v892 = vpop.f32.mrb[0].mxu0
      %v893 = vadd.f32 %v717, %v892
      %v894 = vpop.f32.mrb[0].mxu0
      %895 = vmatprep.mubr.bf16.mxu0 0
      %896 = vmatmul.mubr.bf16.gmra.mrb[0].mxu0 %v692
      %v897 = vpop.f32.mrb[0].mxu0
      %v898 = vadd.f32 %v717, %v897
      %v899 = vpop.f32.mrb[0].mxu0
      %v900 = vpop.f32.mrb[0].mxu0
      %v901 = vadd.f32 %v717, %v900
      %v902 = vpop.f32.mrb[0].mxu0
      %903 = vmatprep.mubr.bf16.mxu0 0
      %904 = vmatmul.mubr.bf16.gmra.mrb[0].mxu0 %v693
      %v905 = vpop.f32.mrb[0].mxu0
      %v906 = vadd.f32 %v717, %v905
      %v907 = vpop.f32.mrb[0].mxu0
      %v908 = vpop.f32.mrb[0].mxu0
      %v909 = vadd.f32 %v717, %v908
      %v910 = vpop.f32.mrb[0].mxu0
      %911 = vmatprep.mubr.bf16.mxu0 0
      %912 = vmatmul.mubr.bf16.gmra.mrb[0].mxu0 %v694
      %v913 = vpop.f32.mrb[0].mxu0
      %v914 = vadd.f32 %v717, %v913
      %v915 = vpop.f32.mrb[0].mxu0
      %v916 = vpop.f32.mrb[0].mxu0
      %v917 = vadd.f32 %v717, %v916
      %v918 = vpop.f32.mrb[0].mxu0
      %919 = vmatprep.mubr.bf16.mxu0 0
      %920 = vmatmul.mubr.bf16.gmra.mrb[0].mxu0 %v695
      %v921 = vpop.f32.mrb[0].mxu0
      %v922 = vadd.f32 %v717, %v921
      %v923 = vpop.f32.mrb[0].mxu0
      %v924 = vpop.f32.mrb[0].mxu0
      %v925 = vadd.f32 %v717, %v924
      %v926 = vpop.f32.mrb[0].mxu0
      %927 = vdwg.mxu0
      %v928 = vmax.f32 %v802, 0.0
      %v929 = vmax.f32 %v805, 0.0
      %v930 = vmax.f32 %v810, 0.0
      %v931 = vmax.f32 %v813, 0.0
      %v932 = vmax.f32 %v818, 0.0
      %v933 = vmax.f32 %v821, 0.0
      %v934 = vmax.f32 %v826, 0.0
      %v935 = vmax.f32 %v829, 0.0
      %v936 = vmax.f32 %v834, 0.0
      %v937 = vmax.f32 %v837, 0.0
      %v938 = vmax.f32 %v842, 0.0
      %v939 = vmax.f32 %v845, 0.0
      %v940 = vmax.f32 %v850, 0.0
      %v941 = vmax.f32 %v853, 0.0
      %v942 = vmax.f32 %v858, 0.0
      %v943 = vmax.f32 %v861, 0.0
      %v944 = vmax.f32 %v866, 0.0
      %v945 = vmax.f32 %v869, 0.0
      %v946 = vmax.f32 %v874, 0.0
      %v947 = vmax.f32 %v877, 0.0
      %v948 = vmax.f32 %v882, 0.0
      %v949 = vmax.f32 %v885, 0.0
      %v950 = vmax.f32 %v890, 0.0
      %v951 = vmax.f32 %v893, 0.0
      %v952 = vmax.f32 %v898, 0.0
      %v953 = vmax.f32 %v901, 0.0
      %v954 = vmax.f32 %v906, 0.0
      %v955 = vmax.f32 %v909, 0.0
      %v956 = vmax.f32 %v914, 0.0
      %v957 = vmax.f32 %v917, 0.0
      %v958 = vmax.f32 %v922, 0.0
      %v959 = vmax.f32 %v925, 0.0
      %v960 = vpack.c.bf16 %v929, %v928
      %v961 = vpack.c.bf16 %v931, %v930
      %v962 = vpack.c.bf16 %v933, %v932
      %v963 = vpack.c.bf16 %v935, %v934
      %v964 = vpack.c.bf16 %v937, %v936
      %v965 = vpack.c.bf16 %v939, %v938
      %v966 = vpack.c.bf16 %v941, %v940
      %v967 = vpack.c.bf16 %v943, %v942
      %v968 = vpack.c.bf16 %v945, %v944
      %v969 = vpack.c.bf16 %v947, %v946
      %v970 = vpack.c.bf16 %v949, %v948
      %v971 = vpack.c.bf16 %v951, %v950
      %v972 = vpack.c.bf16 %v953, %v952
      %v973 = vpack.c.bf16 %v955, %v954
      %v974 = vpack.c.bf16 %v957, %v956
      %v975 = vpack.c.bf16 %v959, %v958
      %v976 = vld [vmem:[%s5] sm:$0xf]
      %v977 = vld [vmem:[%s5 + $0x4] sm:$0xf]
      %v978 = vld [vmem:[%s5 + $0x8] sm:$0xf]
      %v979 = vld [vmem:[%s5 + $0xc] sm:$0xf]
      %v980 = vld [vmem:[%s5 + $0x10] sm:$0xf]
      %v981 = vld [vmem:[%s5 + $0x14] sm:$0xf]
      %v982 = vld [vmem:[%s5 + $0x18] sm:$0xf]
      %v983 = vld [vmem:[%s5 + $0x1c] sm:$0xf]
      %v984 = vld [vmem:[%s6] sm:$0x1]
      %v986 = vlaneseq
      %v987 = vshrl.u32 %v986, 7
      %v988 = vsub.s32 0, %v987
      %v989 = vrot.slane %v984, %v988
      %v999 = vunpack.c.l.b16 %v976
      %v1000 = vunpack.c.l.b16 %v977
      %v1001 = vunpack.c.l.b16 %v978
      %v1002 = vunpack.c.l.b16 %v979
      %v1003 = vunpack.c.l.b16 %v980
      %v1004 = vunpack.c.l.b16 %v981
      %v1005 = vunpack.c.l.b16 %v982
      %v1006 = vunpack.c.l.b16 %v983
      %v1007 = vpack.c.b16 %v1000, %v999
      %v1008 = vpack.c.b16 %v1002, %v1001
      %v1009 = vpack.c.b16 %v1004, %v1003
      %v1010 = vpack.c.b16 %v1006, %v1005
      %vm1015 = vcmask 523264
      %v1017 = vsel %vm1015, %v960, 0
      %v1020 = vsel %vm1015, %v961, 0
      %v1023 = vsel %vm1015, %v962, 0
      %v1026 = vsel %vm1015, %v963, 0
      %v1029 = vsel %vm1015, %v964, 0
      %v1032 = vsel %vm1015, %v965, 0
      %v1035 = vsel %vm1015, %v966, 0
      %v1038 = vsel %vm1015, %v967, 0
      %v1041 = vsel %vm1015, %v968, 0
      %v1044 = vsel %vm1015, %v969, 0
      %v1047 = vsel %vm1015, %v970, 0
      %v1050 = vsel %vm1015, %v971, 0
      %v1053 = vsel %vm1015, %v972, 0
      %v1056 = vsel %vm1015, %v973, 0
      %v1059 = vsel %vm1015, %v974, 0
      %v1062 = vsel %vm1015, %v975, 0
      %1064 = vmatprep.subr.bf16.mxu0 0
      %1065 = vmatpush1.bf16.msra.mxu0 %v1007
      %1066 = vmatprep.subr.bf16.mxu0 0
      %1067 = vmatpush1.bf16.msra.mxu0 %v1008
      %1068 = vmatprep.subr.bf16.mxu0 0
      %1069 = vmatpush1.bf16.msra.mxu0 %v1009
      %1070 = vmatprep.subr.bf16.mxu0 0
      %1071 = vmatpush1.bf16.msra.mxu0 %v1010
      %1072 = vmatprep.subr.bf16.mxu0 0
      %1073 = vmatpush1.bf16.msra.mxu0 0
      %1074 = vmatprep.subr.bf16.mxu0 0
      %1075 = vmatpush1.bf16.msra.mxu0 0
      %1076 = vmatprep.subr.bf16.mxu0 0
      %1077 = vmatpush1.bf16.msra.mxu0 0
      %1078 = vmatprep.subr.bf16.mxu0 0
      %1079 = vmatpush1.bf16.msra.mxu0 0
      %1080 = vmatprep.subr.bf16.mxu0 0
      %1081 = vmatpush1.bf16.msra.mxu0 0
      %1082 = vmatprep.subr.bf16.mxu0 0
      %1083 = vmatpush1.bf16.msra.mxu0 0
      %1084 = vmatprep.subr.bf16.mxu0 0
      %1085 = vmatpush1.bf16.msra.mxu0 0
      %1086 = vmatprep.subr.bf16.mxu0 0
      %1087 = vmatpush1.bf16.msra.mxu0 0
      %1088 = vmatprep.subr.bf16.mxu0 0
      %1089 = vmatpush1.bf16.msra.mxu0 0
      %1090 = vmatprep.subr.bf16.mxu0 0
      %1091 = vmatpush1.bf16.msra.mxu0 0
      %1092 = vmatprep.subr.bf16.mxu0 0
      %1093 = vmatpush1.bf16.msra.mxu0 0
      %1094 = vmatprep.subr.bf16.mxu0 0
      %1095 = vmatpush1.bf16.msra.mxu0 0
      %1096 = vmatprep.mubr.bf16.mxu0 0
      %1097 = vmatmul.mubr.bf16.gmra.mrb[0].mxu0 %v1017
      %v1098 = vpop.f32.mrb[0].mxu0
      %v1099 = vadd.f32 %v989, %v1098
      %v1100 = vpop.f32.mrb[0].mxu0
      %v1101 = vpop.f32.mrb[0].mxu0
      %v1102 = vadd.f32 %v989, %v1101
      %v1103 = vpop.f32.mrb[0].mxu0
      %1104 = vmatprep.mubr.bf16.mxu0 0
      %1105 = vmatmul.mubr.bf16.gmra.mrb[0].mxu0 %v1020
      %v1106 = vpop.f32.mrb[0].mxu0
      %v1107 = vadd.f32 %v989, %v1106
      %v1108 = vpop.f32.mrb[0].mxu0
      %v1109 = vpop.f32.mrb[0].mxu0
      %v1110 = vadd.f32 %v989, %v1109
      %v1111 = vpop.f32.mrb[0].mxu0
      %1112 = vmatprep.mubr.bf16.mxu0 0
      %1113 = vmatmul.mubr.bf16.gmra.mrb[0].mxu0 %v1023
      %v1114 = vpop.f32.mrb[0].mxu0
      %v1115 = vadd.f32 %v989, %v1114
      %v1116 = vpop.f32.mrb[0].mxu0
      %v1117 = vpop.f32.mrb[0].mxu0
      %v1118 = vadd.f32 %v989, %v1117
      %v1119 = vpop.f32.mrb[0].mxu0
      %1120 = vmatprep.mubr.bf16.mxu0 0
      %1121 = vmatmul.mubr.bf16.gmra.mrb[0].mxu0 %v1026
      %v1122 = vpop.f32.mrb[0].mxu0
      %v1123 = vadd.f32 %v989, %v1122
      %v1124 = vpop.f32.mrb[0].mxu0
      %v1125 = vpop.f32.mrb[0].mxu0
      %v1126 = vadd.f32 %v989, %v1125
      %v1127 = vpop.f32.mrb[0].mxu0
      %1128 = vmatprep.mubr.bf16.mxu0 0
      %1129 = vmatmul.mubr.bf16.gmra.mrb[0].mxu0 %v1029
      %v1130 = vpop.f32.mrb[0].mxu0
      %v1131 = vadd.f32 %v989, %v1130
      %v1132 = vpop.f32.mrb[0].mxu0
      %v1133 = vpop.f32.mrb[0].mxu0
      %v1134 = vadd.f32 %v989, %v1133
      %v1135 = vpop.f32.mrb[0].mxu0
      %1136 = vmatprep.mubr.bf16.mxu0 0
      %1137 = vmatmul.mubr.bf16.gmra.mrb[0].mxu0 %v1032
      %v1138 = vpop.f32.mrb[0].mxu0
      %v1139 = vadd.f32 %v989, %v1138
      %v1140 = vpop.f32.mrb[0].mxu0
      %v1141 = vpop.f32.mrb[0].mxu0
      %v1142 = vadd.f32 %v989, %v1141
      %v1143 = vpop.f32.mrb[0].mxu0
      %1144 = vmatprep.mubr.bf16.mxu0 0
      %1145 = vmatmul.mubr.bf16.gmra.mrb[0].mxu0 %v1035
      %v1146 = vpop.f32.mrb[0].mxu0
      %v1147 = vadd.f32 %v989, %v1146
      %v1148 = vpop.f32.mrb[0].mxu0
      %v1149 = vpop.f32.mrb[0].mxu0
      %v1150 = vadd.f32 %v989, %v1149
      %v1151 = vpop.f32.mrb[0].mxu0
      %1152 = vmatprep.mubr.bf16.mxu0 0
      %1153 = vmatmul.mubr.bf16.gmra.mrb[0].mxu0 %v1038
      %v1154 = vpop.f32.mrb[0].mxu0
      %v1155 = vadd.f32 %v989, %v1154
      %v1156 = vpop.f32.mrb[0].mxu0
      %v1157 = vpop.f32.mrb[0].mxu0
      %v1158 = vadd.f32 %v989, %v1157
      %v1159 = vpop.f32.mrb[0].mxu0
      %1160 = vmatprep.mubr.bf16.mxu0 0
      %1161 = vmatmul.mubr.bf16.gmra.mrb[0].mxu0 %v1041
      %v1162 = vpop.f32.mrb[0].mxu0
      %v1163 = vadd.f32 %v989, %v1162
      %v1164 = vpop.f32.mrb[0].mxu0
      %v1165 = vpop.f32.mrb[0].mxu0
      %v1166 = vadd.f32 %v989, %v1165
      %v1167 = vpop.f32.mrb[0].mxu0
      %1168 = vmatprep.mubr.bf16.mxu0 0
      %1169 = vmatmul.mubr.bf16.gmra.mrb[0].mxu0 %v1044
      %v1170 = vpop.f32.mrb[0].mxu0
      %v1171 = vadd.f32 %v989, %v1170
      %v1172 = vpop.f32.mrb[0].mxu0
      %v1173 = vpop.f32.mrb[0].mxu0
      %v1174 = vadd.f32 %v989, %v1173
      %v1175 = vpop.f32.mrb[0].mxu0
      %1176 = vmatprep.mubr.bf16.mxu0 0
      %1177 = vmatmul.mubr.bf16.gmra.mrb[0].mxu0 %v1047
      %v1178 = vpop.f32.mrb[0].mxu0
      %v1179 = vadd.f32 %v989, %v1178
      %v1180 = vpop.f32.mrb[0].mxu0
      %v1181 = vpop.f32.mrb[0].mxu0
      %v1182 = vadd.f32 %v989, %v1181
      %v1183 = vpop.f32.mrb[0].mxu0
      %1184 = vmatprep.mubr.bf16.mxu0 0
      %1185 = vmatmul.mubr.bf16.gmra.mrb[0].mxu0 %v1050
      %v1186 = vpop.f32.mrb[0].mxu0
      %v1187 = vadd.f32 %v989, %v1186
      %v1188 = vpop.f32.mrb[0].mxu0
      %v1189 = vpop.f32.mrb[0].mxu0
      %v1190 = vadd.f32 %v989, %v1189
      %v1191 = vpop.f32.mrb[0].mxu0
      %1192 = vmatprep.mubr.bf16.mxu0 0
      %1193 = vmatmul.mubr.bf16.gmra.mrb[0].mxu0 %v1053
      %v1194 = vpop.f32.mrb[0].mxu0
      %v1195 = vadd.f32 %v989, %v1194
      %v1196 = vpop.f32.mrb[0].mxu0
      %v1197 = vpop.f32.mrb[0].mxu0
      %v1198 = vadd.f32 %v989, %v1197
      %v1199 = vpop.f32.mrb[0].mxu0
      %1200 = vmatprep.mubr.bf16.mxu0 0
      %1201 = vmatmul.mubr.bf16.gmra.mrb[0].mxu0 %v1056
      %v1202 = vpop.f32.mrb[0].mxu0
      %v1203 = vadd.f32 %v989, %v1202
      %v1204 = vpop.f32.mrb[0].mxu0
      %v1205 = vpop.f32.mrb[0].mxu0
      %v1206 = vadd.f32 %v989, %v1205
      %v1207 = vpop.f32.mrb[0].mxu0
      %1208 = vmatprep.mubr.bf16.mxu0 0
      %1209 = vmatmul.mubr.bf16.gmra.mrb[0].mxu0 %v1059
      %v1210 = vpop.f32.mrb[0].mxu0
      %v1211 = vadd.f32 %v989, %v1210
      %v1212 = vpop.f32.mrb[0].mxu0
      %v1213 = vpop.f32.mrb[0].mxu0
      %v1214 = vadd.f32 %v989, %v1213
      %v1215 = vpop.f32.mrb[0].mxu0
      %1216 = vmatprep.mubr.bf16.mxu0 0
      %1217 = vmatmul.mubr.bf16.gmra.mrb[0].mxu0 %v1062
      %v1218 = vpop.f32.mrb[0].mxu0
      %v1219 = vadd.f32 %v989, %v1218
      %v1220 = vpop.f32.mrb[0].mxu0
      %v1221 = vpop.f32.mrb[0].mxu0
      %v1222 = vadd.f32 %v989, %v1221
      %v1223 = vpop.f32.mrb[0].mxu0
      %1224 = vdwg.mxu0
      %v1225 = vpack.c.bf16 %v1102, %v1099
      %v1226 = vpack.c.bf16 %v1110, %v1107
      %v1227 = vpack.c.bf16 %v1118, %v1115
      %v1228 = vpack.c.bf16 %v1126, %v1123
      %v1229 = vpack.c.bf16 %v1134, %v1131
      %v1230 = vpack.c.bf16 %v1142, %v1139
      %v1231 = vpack.c.bf16 %v1150, %v1147
      %v1232 = vpack.c.bf16 %v1158, %v1155
      %v1233 = vpack.c.bf16 %v1166, %v1163
      %v1234 = vpack.c.bf16 %v1174, %v1171
      %v1235 = vpack.c.bf16 %v1182, %v1179
      %v1236 = vpack.c.bf16 %v1190, %v1187
      %v1237 = vpack.c.bf16 %v1198, %v1195
      %v1238 = vpack.c.bf16 %v1206, %v1203
      %v1239 = vpack.c.bf16 %v1214, %v1211
      %v1240 = vpack.c.bf16 %v1222, %v1219
      %v1257 = vunpack.c.l.b16 %v1225
      %v1258 = vunpack.c.h.b16 %v1225
      %v1259 = vunpack.c.l.b16 %v1226
      %v1260 = vunpack.c.h.b16 %v1226
      %v1261 = vunpack.c.l.b16 %v1227
      %v1262 = vunpack.c.h.b16 %v1227
      %v1263 = vunpack.c.l.b16 %v1228
      %v1264 = vunpack.c.h.b16 %v1228
      %v1265 = vunpack.c.l.b16 %v1229
      %v1266 = vunpack.c.h.b16 %v1229
      %v1267 = vunpack.c.l.b16 %v1230
      %v1268 = vunpack.c.h.b16 %v1230
      %v1269 = vunpack.c.l.b16 %v1231
      %v1270 = vunpack.c.h.b16 %v1231
      %v1271 = vunpack.c.l.b16 %v1232
      %v1272 = vunpack.c.h.b16 %v1232
      %v1273 = vunpack.c.l.b16 %v1233
      %v1274 = vunpack.c.h.b16 %v1233
      %v1275 = vunpack.c.l.b16 %v1234
      %v1276 = vunpack.c.h.b16 %v1234
      %v1277 = vunpack.c.l.b16 %v1235
      %v1278 = vunpack.c.h.b16 %v1235
      %v1279 = vunpack.c.l.b16 %v1236
      %v1280 = vunpack.c.h.b16 %v1236
      %v1281 = vunpack.c.l.b16 %v1237
      %v1282 = vunpack.c.h.b16 %v1237
      %v1283 = vunpack.c.l.b16 %v1238
      %v1284 = vunpack.c.h.b16 %v1238
      %v1285 = vunpack.c.l.b16 %v1239
      %v1286 = vunpack.c.h.b16 %v1239
      %v1287 = vunpack.c.l.b16 %v1240
      %v1288 = vunpack.c.h.b16 %v1240
      %v1289 = vpack.c.b16 %v1257, %v1257
      %v1290 = vpack.c.b16 %v1258, %v1258
      %v1291 = vpack.c.b16 %v1259, %v1259
      %v1292 = vpack.c.b16 %v1260, %v1260
      %v1293 = vpack.c.b16 %v1261, %v1261
      %v1294 = vpack.c.b16 %v1262, %v1262
      %v1295 = vpack.c.b16 %v1263, %v1263
      %v1296 = vpack.c.b16 %v1264, %v1264
      %v1297 = vpack.c.b16 %v1265, %v1265
      %v1298 = vpack.c.b16 %v1266, %v1266
      %v1299 = vpack.c.b16 %v1267, %v1267
      %v1300 = vpack.c.b16 %v1268, %v1268
      %v1301 = vpack.c.b16 %v1269, %v1269
      %v1302 = vpack.c.b16 %v1270, %v1270
      %v1303 = vpack.c.b16 %v1271, %v1271
      %v1304 = vpack.c.b16 %v1272, %v1272
      %v1305 = vpack.c.b16 %v1273, %v1273
      %v1306 = vpack.c.b16 %v1274, %v1274
      %v1307 = vpack.c.b16 %v1275, %v1275
      %v1308 = vpack.c.b16 %v1276, %v1276
      %v1309 = vpack.c.b16 %v1277, %v1277
      %v1310 = vpack.c.b16 %v1278, %v1278
      %v1311 = vpack.c.b16 %v1279, %v1279
      %v1312 = vpack.c.b16 %v1280, %v1280
      %v1313 = vpack.c.b16 %v1281, %v1281
      %v1314 = vpack.c.b16 %v1282, %v1282
      %v1315 = vpack.c.b16 %v1283, %v1283
      %v1316 = vpack.c.b16 %v1284, %v1284
      %v1317 = vpack.c.b16 %v1285, %v1285
      %v1318 = vpack.c.b16 %v1286, %v1286
      %v1319 = vpack.c.b16 %v1287, %v1287
      %v1320 = vpack.c.b16 %v1288, %v1288
      %1353 = vst [vmem:[%s280] sm:$0xf] %v1289
      %1354 = vst [vmem:[%s280 + $0x4] sm:$0xf] %v1290
      %1355 = vst [vmem:[%s280 + $0x8] sm:$0xf] %v1291
      %1356 = vst [vmem:[%s280 + $0xc] sm:$0xf] %v1292
      %1357 = vst [vmem:[%s280 + $0x10] sm:$0xf] %v1293
      %1358 = vst [vmem:[%s280 + $0x14] sm:$0xf] %v1294
      %1359 = vst [vmem:[%s280 + $0x18] sm:$0xf] %v1295
      %1360 = vst [vmem:[%s280 + $0x1c] sm:$0xf] %v1296
      %1361 = vst [vmem:[%s280 + $0x20] sm:$0xf] %v1297
      %1362 = vst [vmem:[%s280 + $0x24] sm:$0xf] %v1298
      %1363 = vst [vmem:[%s280 + $0x28] sm:$0xf] %v1299
      %1364 = vst [vmem:[%s280 + $0x2c] sm:$0xf] %v1300
      %1365 = vst [vmem:[%s280 + $0x30] sm:$0xf] %v1301
      %1366 = vst [vmem:[%s280 + $0x34] sm:$0xf] %v1302
      %1367 = vst [vmem:[%s280 + $0x38] sm:$0xf] %v1303
      %1368 = vst [vmem:[%s280 + $0x3c] sm:$0xf] %v1304
      %1369 = vst [vmem:[%s280 + $0x40] sm:$0xf] %v1305
      %1370 = vst [vmem:[%s280 + $0x44] sm:$0xf] %v1306
      %1371 = vst [vmem:[%s280 + $0x48] sm:$0xf] %v1307
      %1372 = vst [vmem:[%s280 + $0x4c] sm:$0xf] %v1308
      %1373 = vst [vmem:[%s280 + $0x50] sm:$0xf] %v1309
      %1374 = vst [vmem:[%s280 + $0x54] sm:$0xf] %v1310
      %1375 = vst [vmem:[%s280 + $0x58] sm:$0xf] %v1311
      %1376 = vst [vmem:[%s280 + $0x5c] sm:$0xf] %v1312
      %1377 = vst [vmem:[%s280 + $0x60] sm:$0xf] %v1313
      %1378 = vst [vmem:[%s280 + $0x64] sm:$0xf] %v1314
      %1379 = vst [vmem:[%s280 + $0x68] sm:$0xf] %v1315
      %1380 = vst [vmem:[%s280 + $0x6c] sm:$0xf] %v1316
      %1381 = vst [vmem:[%s280 + $0x70] sm:$0xf] %v1317
      %1382 = vst [vmem:[%s280 + $0x74] sm:$0xf] %v1318
      %1383 = vst [vmem:[%s280 + $0x78] sm:$0xf] %v1319
      %1384 = vst [vmem:[%s280 + $0x7c] sm:$0xf] %v1320
      %s1385 = smul.u32 32, %s18
      %p1386 = scmp.lt.s32.totalorder %s1385, 63
      %s1387 = scalar_select %p1386, %s1385, 63
      %s1388 = smul.addr %s1387, 4
      %s1389 = scalar_lea.vmem %s7, %s1388
      // Predicated region
      $region49: #{_lambda_.1} parent=47 // pred_check
        %p1390 = pneg %p188
      $region50: #{_lambda_.1} parent=47 // pred_check_branch
        %1392 = sbr.rel (%p1390) target = $region52
      $region51: #{_lambda_.1} parent=47 // pred_region
        %s1393 = smul.u32 32, %s18
      $region52: #{_lambda_.1} parent=47 // pred_fallthru
        _
    $region48: #{_lambda_.1} parent=5 // pred_fallthru
      _
    %p1394 = scmp.le.s32.totalorder 2, %s13
    // Predicated region
    $region53: #{_lambda_.1} parent=5 // pred_check
      %p1395 = pneg %p1394
    $region54: #{_lambda_.1} parent=5 // pred_check_branch
      %1397 = sbr.rel (%p1395) target = $region56
    $region55: #{_lambda_.1} parent=5 // pred_region
      %s1398 = ssub.s32 %s13, 2
      // Predicated region
      $region57: #{_lambda_.1} parent=55 // pred_check
        %p1399 = pneg %p194
      $region58: #{_lambda_.1} parent=55 // pred_check_branch
        %1401 = sbr.rel (%p1399) target = $region60
      $region59: #{_lambda_.1} parent=55 // pred_region
        %s1402 = smul.u32 32, %s19
        %p1403 = scmp.lt.s32.totalorder %s1402, 63
        %s1404 = scalar_select %p1403, %s1402, 63
        %s1405 = smul.addr %s1404, 4
        %s1406 = scalar_lea.vmem %s7, %s1405
      $region60: #{_lambda_.1} parent=55 // pred_fallthru
        _
    $region56: #{_lambda_.1} parent=5 // pred_fallthru
      _
  $region6: #{_lambda_.1} parent=0 // loop_footer
    %s17 = sadd.s32 1, %s13
  $region7: #{_lambda_.1} parent=0 // loop_footer_branch
    %12 = sbr.rel target = $region3
  $region8: #{_lambda_.1} parent=0 // loop_exit
    _

</llo_original>
